<compile_context>
chip_gen: v5e
topology: v5e:2x2
jax: 0.10.0
libtpu: 0.0.40
codegen_flags: <defaults>
</compile_context>

<pallas_src>
import jax
import jax.numpy as jnp
from jax.experimental import pallas as pl
from jax.experimental.pallas import tpu as pltpu


def _topic_embedding_kernel(w_ref, t_ref, o_ref):
    # Numerically-stable softmax over topics (axis=-1), computed in f32.
    w = w_ref[...].astype(jnp.float32)                       # [TB, T]
    m = jnp.max(w, axis=-1, keepdims=True)                   # [TB, 1]
    e = jnp.exp(w - m)                                       # [TB, T]
    denom = jnp.sum(e, axis=-1, keepdims=True)               # [TB, 1]  (>= 1)
    # EUP approximate reciprocal + two Newton-Raphson steps: the EUP slot is
    # otherwise idle and the VPU refinement is free filler on a memory-bound
    # kernel, while restoring ~f32 accuracy.
    inv = pl.reciprocal(denom, approx=True)
    inv = inv * (2.0 - denom * inv)
    inv = inv * (2.0 - denom * inv)
    probs = e * inv                                          # [TB, T]
    # Weighted sum of topic vectors == probs @ topic_vectors (MXU, f32 acc).
    out = jnp.dot(probs, t_ref[...].astype(jnp.float32),
                  preferred_element_type=jnp.float32)        # [TB, D]
    o_ref[...] = out.astype(o_ref.dtype)


def _round_up(x, m):
    return (x + m - 1) // m * m


def topic_embedding_forward(doc_weights, topic_vectors, *, block_rows=None):
    """lda2vec topic_embedding.forward.

    doc_weights  : [B, n_topics]   document logits over topics (any float dtype)
    topic_vectors: [n_topics, D]   topic vector table
    returns      : [B, D] = softmax(doc_weights, axis=1) @ topic_vectors
    """
    B, T = doc_weights.shape
    T2, D = topic_vectors.shape
    assert T == T2

    out_dtype = doc_weights.dtype
    in_itemsize = jnp.dtype(doc_weights.dtype).itemsize
    out_itemsize = jnp.dtype(out_dtype).itemsize

    if block_rows is None:
        # Largest batch tile whose double-buffered working set
        #   2 * TB*T (in) + 2 * TB*D (out) + T*D (resident table)
        # stays well under the smallest scoped-VMEM default across
        # v5e / v6e / v7x.  Clamp to [8, 1024] rows.
        budget = 8 * 1024 * 1024
        table_bytes = T * D * jnp.dtype(topic_vectors.dtype).itemsize
        per_row = 2 * T * in_itemsize + 2 * D * out_itemsize
        block_rows = (budget - table_bytes) // max(per_row, 1)
        block_rows = max(8, min(1024, int(block_rows)))
    block_rows = _round_up(min(int(block_rows), max(B, 1)), 8)

    # Pad B so it divides evenly into tiles (no-op when already aligned);
    # padded rows are computed and sliced off afterwards.
    padded_B = _round_up(B, block_rows)
    dw = doc_weights
    if padded_B != B:
        dw = jnp.pad(dw, ((0, padded_B - B), (0, 0)))

    grid = (padded_B // block_rows,)

    out = pl.pallas_call(
        _topic_embedding_kernel,
        out_shape=jax.ShapeDtypeStruct((padded_B, D), out_dtype),
        grid_spec=pltpu.PrefetchScalarGridSpec(
            num_scalar_prefetch=0,
            grid=grid,
            in_specs=[
                # doc_weights: streamed, one batch tile per grid step
                # (auto double-buffered by the BlockSpec pipeline).
                pl.BlockSpec((block_rows, T), lambda i: (i, 0)),
                # topic table: constant index map -> resident in VMEM,
                # fetched once rather than once per batch tile.
                pl.BlockSpec((T, D), lambda i: (0, 0)),
            ],
            out_specs=pl.BlockSpec((block_rows, D), lambda i: (i, 0)),
        ),
        compiler_params=pltpu.CompilerParams(
            # Batch tiles are fully independent: on v7x this lets Mosaic
            # shard grid steps across both TensorCores; harmless on v5e/v6e.
            dimension_semantics=("parallel",),
        ),
    )(dw, topic_vectors)

    if padded_B != B:
        out = out[:B]
    return out


def make_topic_vectors(key, n_topics, embedding_dim):
    """Deterministic stand-in for scipy ortho_group.rvs: rows of an orthonormal
    matrix obtained from a QR decomposition of a Gaussian matrix."""
    assert n_topics < embedding_dim
    g = jax.random.normal(key, (embedding_dim, embedding_dim), dtype=jnp.float32)
    q, r = jnp.linalg.qr(g)
    # sign-fix for a well-defined (Haar-like) orthogonal matrix
    q = q * jnp.sign(jnp.diag(r))[None, :]
    return q[:n_topics, :]  # [n_topics, embedding_dim]


if __name__ == "__main__":
    key = jax.random.PRNGKey(0)
    k_w, k_t = jax.random.split(key)

    batch_size = 64       # small demo; block_rows=16 still exercises a 4-step
    n_topics = 8          # pipelined grid with the resident topic table.
    embedding_dim = 32

    doc_weights = jax.random.normal(k_w, (batch_size, n_topics), dtype=jnp.float32)
    topic_vectors = make_topic_vectors(k_t, n_topics, embedding_dim)

    out = topic_embedding_forward(doc_weights, topic_vectors, block_rows=16)
    out = jax.block_until_ready(out)

    # reference check in plain JAX
    probs_ref = jax.nn.softmax(doc_weights, axis=1)
    ref = probs_ref @ topic_vectors
    assert out.shape == (batch_size, embedding_dim)
    assert jnp.allclose(out, ref, atol=1e-5, rtol=1e-5)

    print("KERNEL_OK")
</pallas_src>

<mosaic_0001>
module attributes {stable_mosaic.version = 11 : i64} {
  func.func @_topic_embedding_kernel(%arg0: i32, %arg1: memref<16x8xf32, #tpu.memory_space<vmem>>, %arg2: memref<8x32xf32, #tpu.memory_space<vmem>>, %arg3: memref<16x32xf32, #tpu.memory_space<vmem>>) attributes {dimension_semantics = [#tpu.dimension_semantics<parallel>], iteration_bounds = array<i64: 4>, scalar_prefetch = 0 : i64, scratch_operands = 0 : i64, tpu.core_type = #tpu.core_type<tc>, window_params = [{transform_indices = @transform_0, window_bounds = array<i64: 16, 8>}, {pipeline_mode = #tpu.pipeline_mode<synchronous>, transform_indices = @transform_1, window_bounds = array<i64: 8, 32>}, {transform_indices = @transform_2, window_bounds = array<i64: 16, 32>}]} {
    %c0 = arith.constant 0 : index
    %c0_0 = arith.constant 0 : index
    %0 = vector.load %arg1[%c0, %c0_0] : memref<16x8xf32, #tpu.memory_space<vmem>>, vector<16x8xf32>
    %cst = arith.constant dense<0xFF800000> : vector<16xf32>
    %1 = vector.multi_reduction <maximumf>, %0, %cst [1] : vector<16x8xf32> to vector<16xf32>
    %2 = vector.shape_cast %1 : vector<16xf32> to vector<16x1xf32>
    %3 = vector.broadcast %2 : vector<16x1xf32> to vector<16x8xf32>
    %4 = arith.subf %0, %3 : vector<16x8xf32>
    %5 = math.exp %4 : vector<16x8xf32>
    %cst_1 = arith.constant dense<0.000000e+00> : vector<16xf32>
    %6 = vector.multi_reduction <add>, %5, %cst_1 [1] : vector<16x8xf32> to vector<16xf32>
    %7 = vector.shape_cast %6 : vector<16xf32> to vector<16x1xf32>
    %8 = tpu.reciprocal %7 {approx = true} : vector<16x1xf32> -> vector<16x1xf32>
    %9 = arith.mulf %7, %8 : vector<16x1xf32>
    %cst_2 = arith.constant 2.000000e+00 : f32
    %10 = vector.broadcast %cst_2 : f32 to vector<16x1xf32>
    %11 = arith.subf %10, %9 : vector<16x1xf32>
    %12 = arith.mulf %8, %11 : vector<16x1xf32>
    %13 = arith.mulf %7, %12 : vector<16x1xf32>
    %cst_3 = arith.constant 2.000000e+00 : f32
    %14 = vector.broadcast %cst_3 : f32 to vector<16x1xf32>
    %15 = arith.subf %14, %13 : vector<16x1xf32>
    %16 = arith.mulf %12, %15 : vector<16x1xf32>
    %17 = vector.broadcast %16 : vector<16x1xf32> to vector<16x8xf32>
    %18 = arith.mulf %5, %17 : vector<16x8xf32>
    %c0_4 = arith.constant 0 : index
    %c0_5 = arith.constant 0 : index
    %19 = vector.load %arg2[%c0_4, %c0_5] : memref<8x32xf32, #tpu.memory_space<vmem>>, vector<8x32xf32>
    %cst_6 = arith.constant dense<0.000000e+00> : vector<16x32xf32>
    %20 = tpu.matmul %18, %19, %cst_6 {dimension_numbers = #tpu.dot_dimension_numbers<[1], [0], [0], [1], [0, 0, 1, 1], [], []>} : vector<16x8xf32>, vector<8x32xf32>, vector<16x32xf32> -> vector<16x32xf32>
    %c0_7 = arith.constant 0 : index
    %c0_8 = arith.constant 0 : index
    %21 = vector.load %arg3[%c0_7, %c0_8] : memref<16x32xf32, #tpu.memory_space<vmem>>, vector<16x32xf32>
    tpu.vector_store %arg3[%c0_7, %c0_8], %20 {strides = array<i32>} : memref<16x32xf32, #tpu.memory_space<vmem>>, vector<16x32xf32>,
    return
  }
  func.func @transform_0(%arg0: i32) -> (i32, i32) {
    %c0_i32 = arith.constant 0 : i32
    %c0_i32_0 = arith.constant 0 : i32
    return %arg0, %c0_i32 : i32, i32
  }
  func.func @transform_1(%arg0: i32) -> (i32, i32) {
    %c0_i32 = arith.constant 0 : i32
    %c0_i32_0 = arith.constant 0 : i32
    %c0_i32_1 = arith.constant 0 : i32
    return %c0_i32, %c0_i32_0 : i32, i32
  }
  func.func @transform_2(%arg0: i32) -> (i32, i32) {
    %c0_i32 = arith.constant 0 : i32
    %c0_i32_0 = arith.constant 0 : i32
    return %arg0, %c0_i32 : i32, i32
  }
}

</mosaic_0001>

<llo_original>
// kernel: tpu_custom_call.1
$region0: #{tpu_custom_call.1}
  #allocation0 [shape = 'u32[]', space=smem, size = 0x4, offset = 0x4, fixed_abs, tag = 'smem constant byte address 0x4 - core index']
  #allocation1 [shape = 'u32[72,128]{1,0:T(1,128)}', space=vmem, size = 0x9000, scoped, tag = 'internal scratch']
  %s0 = inlined_call_operand.vmem [shape: f32[64,8], index: 0, kind: input, shape index: {}]
  %s1 = inlined_call_operand.vmem [shape: f32[8,32], index: 1, kind: input, shape index: {}]
  %s2 = inlined_call_operand.vmem [shape: f32[64,32], index: 2, kind: output, shape index: {}]
  %s3 = sld [smem:[#allocation0]]
  $region41: #{tpu_custom_call.1} parent=0
    _
  %s5 = ssub.s32 1, %s3
  %s6 = scalar_select 0, %s5, %s3
  loop: start=0, step=1, limit=6
  $region2: #{tpu_custom_call.1} parent=0 // loop_pre_header
    _
  $region3: #{tpu_custom_call.1} parent=0 // loop_header
    %s8 = sphi 0, %s12
    %p9 = scmp.ge.s32.totalorder %s8, 6
    %s18 = sphi 0, %s20
    %s21 = sphi 0, %s18
    %s22 = sphi 0, %s21
    %s38 = sphi 0, %s22
    %s42 = sphi 0, %s42
    %s44 = sphi 0, %s42
    %s45 = sphi 0, %s44
    %s59 = sphi 0, %s45
    %s65 = sphi 0, %s67
    %s68 = sphi 0, %s65
    %s69 = sphi 0, %s68
    %s85 = sphi 0, %s69
  $region4: #{tpu_custom_call.1} parent=0 // loop_header_branch
    %11 = sbr.rel (%p9) target = $region8
  $region5: #{tpu_custom_call.1} parent=0 // loop_body
    %s13 = ssub.s32 %s8, 1
    %s14 = ssub.s32 %s8, 2
    %s15 = sadd.s32 %s8, 1
    %s16 = ssub.s32 %s8, %s15
    %p17 = scmp.eq.s32.totalorder %s16, 0
    %s19 = sadd.s32 %s18, 1
    %s20 = scalar_select %p17, %s18, %s19
    %p23 = pneg %p17
    %p24 = scmp.eq.s32.totalorder %s8, 3
    %p25 = por %p23, %p24
    %p26 = scmp.ne.s32.totalorder %s18, %s21
    %p27 = scmp.eq.s32.totalorder %s8, 0
    %p28 = por %p26, %p27
    %p29 = scmp.ne.s32.totalorder %s18, %s21
    %p30 = scmp.eq.s32.totalorder %s13, 3
    %p31 = por %p29, %p30
    %p32 = scmp.ne.s32.totalorder %s21, %s22
    %p33 = scmp.eq.s32.totalorder %s13, 0
    %p34 = por %p32, %p33
    %p35 = scmp.ne.s32.totalorder %s21, %s22
    %p36 = scmp.eq.s32.totalorder %s14, 3
    %p37 = por %p35, %p36
    %p39 = scmp.ne.s32.totalorder %s22, %s38
    %p40 = scmp.eq.s32.totalorder %s14, 0
    %p41 = por %p39, %p40
    %s43 = sadd.s32 %s42, 1
    %p46 = scmp.eq.s32.totalorder %s8, 3
    %p47 = scmp.ne.s32.totalorder %s42, %s44
    %p48 = scmp.eq.s32.totalorder %s8, 0
    %p49 = por %p47, %p48
    %p50 = scmp.ne.s32.totalorder %s42, %s44
    %p51 = scmp.eq.s32.totalorder %s13, 3
    %p52 = por %p50, %p51
    %p53 = scmp.ne.s32.totalorder %s44, %s45
    %p54 = scmp.eq.s32.totalorder %s13, 0
    %p55 = por %p53, %p54
    %p56 = scmp.ne.s32.totalorder %s44, %s45
    %p57 = scmp.eq.s32.totalorder %s14, 3
    %p58 = por %p56, %p57
    %p60 = scmp.ne.s32.totalorder %s45, %s59
    %p61 = scmp.eq.s32.totalorder %s14, 0
    %p62 = por %p60, %p61
    %s63 = ssub.s32 %s8, %s15
    %p64 = scmp.eq.s32.totalorder %s63, 0
    %s66 = sadd.s32 %s65, 1
    %s67 = scalar_select %p64, %s65, %s66
    %p70 = pneg %p64
    %p71 = scmp.eq.s32.totalorder %s8, 3
    %p72 = por %p70, %p71
    %p73 = scmp.ne.s32.totalorder %s65, %s68
    %p74 = scmp.eq.s32.totalorder %s8, 0
    %p75 = por %p73, %p74
    %p76 = scmp.ne.s32.totalorder %s65, %s68
    %p77 = scmp.eq.s32.totalorder %s13, 3
    %p78 = por %p76, %p77
    %p79 = scmp.ne.s32.totalorder %s68, %s69
    %p80 = scmp.eq.s32.totalorder %s13, 0
    %p81 = por %p79, %p80
    %p82 = scmp.ne.s32.totalorder %s68, %s69
    %p83 = scmp.eq.s32.totalorder %s14, 3
    %p84 = por %p82, %p83
    %p86 = scmp.ne.s32.totalorder %s69, %s85
    %p87 = scmp.eq.s32.totalorder %s14, 0
    %p88 = por %p86, %p87
    %p89 = scmp.le.s32.totalorder 1, %s8
    %p90 = scmp.lt.s32.totalorder %s8, 5
    %p91 = pnand %p89, %p90
    %p92 = pneg %p91
    // Predicated region
    $region9: #{tpu_custom_call.1} parent=5 // pred_check
      _
    $region10: #{tpu_custom_call.1} parent=5 // pred_check_branch
      %94 = sbr.rel (%p91) target = $region12
    $region11: #{tpu_custom_call.1} parent=5 // pred_region
      %s95 = ssub.s32 %s8, 1
      // Predicated region
      $region13: #{tpu_custom_call.1} parent=11 // pred_check
        %p96 = pneg %p55
      $region14: #{tpu_custom_call.1} parent=11 // pred_check_branch
        %98 = sbr.rel (%p96) target = $region16
      $region15: #{tpu_custom_call.1} parent=11 // pred_region
        _
      $region16: #{tpu_custom_call.1} parent=11 // pred_fallthru
        _
    $region12: #{tpu_custom_call.1} parent=5 // pred_fallthru
      _
    %p99 = scmp.lt.s32.totalorder %s8, 4
    // Predicated region
    $region17: #{tpu_custom_call.1} parent=5 // pred_check
      %p100 = pneg %p99
    $region18: #{tpu_custom_call.1} parent=5 // pred_check_branch
      %102 = sbr.rel (%p100) target = $region20
    $region19: #{tpu_custom_call.1} parent=5 // pred_region
      // Predicated region
      $region21: #{tpu_custom_call.1} parent=19 // pred_check
        %p103 = pneg %p28
      $region22: #{tpu_custom_call.1} parent=19 // pred_check_branch
        %105 = sbr.rel (%p103) target = $region24
      $region23: #{tpu_custom_call.1} parent=19 // pred_region
        %s106 = smul.u32 2, %s8
        %p107 = scmp.lt.s32.totalorder %s106, 7
        %s108 = scalar_select %p107, %s106, 7
        %s109 = smul.addr %s108, 8
        %s110 = scalar_lea.vmem %s0, %s109
        %s111 = smul.u32 2, %s8
      $region24: #{tpu_custom_call.1} parent=19 // pred_fallthru
        _
    $region20: #{tpu_custom_call.1} parent=5 // pred_fallthru
      _
    %p112 = scmp.le.s32.totalorder 1, %s8
    %p113 = scmp.lt.s32.totalorder %s8, 5
    %p114 = pnand %p112, %p113
    %p115 = pneg %p114
    // Predicated region
    $region25: #{tpu_custom_call.1} parent=5 // pred_check
      _
    $region26: #{tpu_custom_call.1} parent=5 // pred_check_branch
      %117 = sbr.rel (%p114) target = $region28
    $region27: #{tpu_custom_call.1} parent=5 // pred_region
      %s118 = ssub.s32 %s8, 1
      %s119 = smul.u32 2, %s13
      %p120 = scmp.lt.s32.totalorder %s119, 7
      %s121 = scalar_select %p120, %s119, 7
      %s122 = smul.addr %s121, 8
      %s123 = scalar_lea.vmem %s0, %s122
      %p124 = pneg %p34
      %p125 = pneg %p31
      %p126 = pneg %p55
      %p127 = pneg %p52
      %p128 = pneg %p81
      %p129 = pneg %p78
      %s130 = smul.u32 2, %s13
      %p131 = scmp.lt.s32.totalorder %s130, 7
      %s132 = scalar_select %p131, %s130, 7
      %s133 = smul.addr %s132, 8
      %s134 = scalar_lea.vmem %s2, %s133
      %s135 = smul.u32 2, %s13
      %p136 = scmp.lt.s32.totalorder %s135, 7
      %s137 = scalar_select %p136, %s135, 7
      %s138 = smul.addr %s137, 8
      %s139 = scalar_lea.vmem %s0, %s138
      %s140 = smul.u32 2, %s13
      %s141 = smul.u32 2, %s13
      %p142 = scmp.lt.s32.totalorder %s141, 7
      %s143 = scalar_select %p142, %s141, 7
      %s144 = smul.addr %s143, 8
      %s145 = scalar_lea.vmem %s2, %s144
      %s146 = smul.u32 2, %s13
      %v147 = vld [vmem:[%s139] sm:$0xff]
      %v148 = vld [vmem:[%s139 + $0x8] sm:$0xff]
      %vm149 = vcmask 64512
      %v150 = vsel %vm149, %v147, -inf
      %151 = vmax.xlane.f32.xlu0 %v150
      %v152 = vpop.xlane.xlu0 %151
      %v153 = vsel %vm149, %v148, -inf
      %154 = vmax.xlane.f32.xlu0 %v153
      %v155 = vpop.xlane.xlu0 %154
      %v156 = vsub.f32 %v147, %v152
      %v157 = vsub.f32 %v148, %v155
      %v158 = vmul.f32 %v156, 1.442695
      %v159 = vpow.pop %v158
      %v160 = vmul.f32 %v157, 1.442695
      %v161 = vpow.pop %v160
      %v162 = vsel %vm149, %v159, 0.0
      %163 = vadd.xlane.f32.xlu0 %v162
      %v164 = vpop.xlane.xlu0 %163
      %v165 = vsel %vm149, %v161, 0.0
      %166 = vadd.xlane.f32.xlu0 %v165
      %v167 = vpop.xlane.xlu0 %166
      %v168 = vrcp.pop %v164
      %v169 = vrcp.pop %v167
      %v170 = vmul.f32 %v164, %v168
      %v171 = vmul.f32 %v167, %v169
      %v172 = vsub.f32 2.0, %v170
      %v173 = vsub.f32 2.0, %v171
      %v174 = vmul.f32 %v168, %v172
      %v175 = vmul.f32 %v169, %v173
      %v176 = vmul.f32 %v164, %v174
      %v177 = vmul.f32 %v167, %v175
      %v178 = vsub.f32 2.0, %v176
      %v179 = vsub.f32 2.0, %v177
      %v180 = vmul.f32 %v174, %v178
      %v181 = vmul.f32 %v175, %v179
      %v182 = vmul.f32 %v159, %v180
      %v183 = vmul.f32 %v161, %v181
      %v184 = vld [vmem:[%s1] sm:$0xff]
      %v186 = vsel %vm149, %v182, 0
      %v189 = vsel %vm149, %v183, 0
      %191 = vmatpush.msra.mxu0 0.0
      %192 = vmatpush.msra.mxu0 0.0
      %193 = vmatpush.msra.mxu0 0.0
      %194 = vmatpush.msra.mxu0 0.0
      %195 = vmatpush.msra.mxu0 0.0
      %196 = vmatpush.msra.mxu0 0.0
      %197 = vmatpush.msra.mxu0 0.0
      %198 = vmatpush.msra.mxu0 0.0
      %199 = vmatpush.msra.mxu0 0.0
      %200 = vmatpush.msra.mxu0 0.0
      %201 = vmatpush.msra.mxu0 0.0
      %202 = vmatpush.msra.mxu0 0.0
      %203 = vmatpush.msra.mxu0 0.0
      %204 = vmatpush.msra.mxu0 0.0
      %205 = vmatpush.msra.mxu0 0.0
      %206 = vmatpush.msra.mxu0 %v184
      %207 = vmatmul.f32.gmra.mxu0 %v186
      %v208 = vpop.f32.mrf.mxu0
      %v209 = vadd.f32 0.0, %v208
      %210 = vmatmul.f32.gmra.mxu0 %v189
      %v211 = vpop.f32.mrf.mxu0
      %v212 = vadd.f32 0.0, %v211
      %213 = vdwg.mxu0
      %vm214 = vcmask 261120
      %215 = vst.msk [vmem:[%s145] sm:$0xff] %vm214, %v209
      %216 = vst.msk [vmem:[%s145 + $0x8] sm:$0xff] %vm214, %v212
      %s217 = smul.u32 2, %s13
      %p218 = scmp.lt.s32.totalorder %s217, 7
      %s219 = scalar_select %p218, %s217, 7
      %s220 = smul.addr %s219, 8
      %s221 = scalar_lea.vmem %s2, %s220
      // Predicated region
      $region29: #{tpu_custom_call.1} parent=27 // pred_check
        %p222 = pneg %p78
      $region30: #{tpu_custom_call.1} parent=27 // pred_check_branch
        %224 = sbr.rel (%p222) target = $region32
      $region31: #{tpu_custom_call.1} parent=27 // pred_region
        %s225 = smul.u32 2, %s13
      $region32: #{tpu_custom_call.1} parent=27 // pred_fallthru
        _
    $region28: #{tpu_custom_call.1} parent=5 // pred_fallthru
      _
    %p226 = scmp.le.s32.totalorder 2, %s8
    // Predicated region
    $region33: #{tpu_custom_call.1} parent=5 // pred_check
      %p227 = pneg %p226
    $region34: #{tpu_custom_call.1} parent=5 // pred_check_branch
      %229 = sbr.rel (%p227) target = $region36
    $region35: #{tpu_custom_call.1} parent=5 // pred_region
      %s230 = ssub.s32 %s8, 2
      // Predicated region
      $region37: #{tpu_custom_call.1} parent=35 // pred_check
        %p231 = pneg %p84
      $region38: #{tpu_custom_call.1} parent=35 // pred_check_branch
        %233 = sbr.rel (%p231) target = $region40
      $region39: #{tpu_custom_call.1} parent=35 // pred_region
        %s234 = smul.u32 2, %s14
        %p235 = scmp.lt.s32.totalorder %s234, 7
        %s236 = scalar_select %p235, %s234, 7
        %s237 = smul.addr %s236, 8
        %s238 = scalar_lea.vmem %s2, %s237
      $region40: #{tpu_custom_call.1} parent=35 // pred_fallthru
        _
    $region36: #{tpu_custom_call.1} parent=5 // pred_fallthru
      _
  $region6: #{tpu_custom_call.1} parent=0 // loop_footer
    %s12 = sadd.s32 1, %s8
  $region7: #{tpu_custom_call.1} parent=0 // loop_footer_branch
    %7 = sbr.rel target = $region3
  $region8: #{tpu_custom_call.1} parent=0 // loop_exit
    _

</llo_original>
